<compile_context>
chip_gen: v7x
topology: tpu7x:2x2x1
jax: 0.10.0
libtpu: 0.0.40
codegen_flags: <defaults>
</compile_context>

<pallas_src>
import jax
import jax.numpy as jnp
from jax.experimental import pallas as pl
from jax.experimental.pallas import tpu as pltpu

M, K, N = 64, 64, 64


def addmm_kernel(x_ref, a_ref, b_ref, o_ref):
    # out = x + A @ B : full-f32 MXU matmul + VPU elementwise add.
    acc = jnp.dot(
        a_ref[...],
        b_ref[...],
        preferred_element_type=jnp.float32,
        precision=jax.lax.Precision.HIGHEST,
    )
    o_ref[...] = (x_ref[...] + acc).astype(o_ref.dtype)


def addmm_pallas(x, a, b):
    # 64x64 f32 operands (16 KiB each) trivially fit in VMEM, so the kernel is
    # a single gridless invocation on whole-array VMEM refs: no pipeline
    # scaffolding, no double buffering, no grid bookkeeping.
    flops = 2 * M * K * N
    bytes_accessed = 4 * (M * K + K * N + 2 * M * N)
    return pl.pallas_call(
        addmm_kernel,
        out_shape=jax.ShapeDtypeStruct((M, N), jnp.float32),
        in_specs=[
            pl.BlockSpec(memory_space=pltpu.MemorySpace.VMEM),  # x
            pl.BlockSpec(memory_space=pltpu.MemorySpace.VMEM),  # A
            pl.BlockSpec(memory_space=pltpu.MemorySpace.VMEM),  # B
        ],
        out_specs=pl.BlockSpec(memory_space=pltpu.MemorySpace.VMEM),
        # Write the result in place over x1's buffer (same shape & dtype);
        # x1 is donated at the jit boundary so no defensive copy is inserted.
        input_output_aliases={0: 0},
        cost_estimate=pl.CostEstimate(
            flops=flops, transcendentals=0, bytes_accessed=bytes_accessed
        ),
    )(x, a, b)


def _model_forward(x1, a, b):
    # mirrors Model.forward: returns a list with a single tensor
    return [addmm_pallas(x1, a, b)]


# Donate x1 so the in-kernel alias is realized (x1's device buffer is consumed).
model_forward = jax.jit(_model_forward, donate_argnums=(0,))


if __name__ == "__main__":
    key = jax.random.PRNGKey(0)
    kx, ka, kb = jax.random.split(key, 3)

    # deterministic stand-ins for the torch.randn / torch.rand calls
    x1 = jax.random.normal(kx, (M, N), dtype=jnp.float32)   # torch.randn
    a = jax.random.uniform(ka, (M, K), dtype=jnp.float32)   # torch.rand
    b = jax.random.uniform(kb, (K, N), dtype=jnp.float32)   # torch.rand

    # reference computed BEFORE the call (x1 is donated / aliased by the kernel)
    ref = x1 + a @ b
    ref = jax.block_until_ready(ref)

    (out,) = model_forward(x1, a, b)
    out = jax.block_until_ready(out)

    assert out.shape == (M, N)
    assert jnp.allclose(out, ref, atol=1e-4, rtol=1e-4)

    print("KERNEL_OK")
</pallas_src>

<mosaic_0001>
module attributes {stable_mosaic.version = 11 : i64} {
  func.func @addmm_kernel(%arg0: memref<64x64xf32, #tpu.memory_space<vmem>>, %arg1: memref<64x64xf32, #tpu.memory_space<vmem>>, %arg2: memref<64x64xf32, #tpu.memory_space<vmem>>, %arg3: memref<64x64xf32, #tpu.memory_space<vmem>>) attributes {dimension_semantics = [], scalar_prefetch = 0 : i64, scratch_operands = 0 : i64, tpu.core_type = #tpu.core_type<tc>} {
    %c0 = arith.constant 0 : index
    %c0_0 = arith.constant 0 : index
    %0 = vector.load %arg1[%c0, %c0_0] : memref<64x64xf32, #tpu.memory_space<vmem>>, vector<64x64xf32>
    %c0_1 = arith.constant 0 : index
    %c0_2 = arith.constant 0 : index
    %1 = vector.load %arg2[%c0_1, %c0_2] : memref<64x64xf32, #tpu.memory_space<vmem>>, vector<64x64xf32>
    %cst = arith.constant dense<0.000000e+00> : vector<64x64xf32>
    %2 = tpu.matmul %0, %1, %cst {dimension_numbers = #tpu.dot_dimension_numbers<[1], [0], [0], [1], [0, 0, 1, 1], [], []>, precision = #tpu.contract_precision<fp32>} : vector<64x64xf32>, vector<64x64xf32>, vector<64x64xf32> -> vector<64x64xf32>
    %c0_3 = arith.constant 0 : index
    %c0_4 = arith.constant 0 : index
    %3 = vector.load %arg0[%c0_3, %c0_4] : memref<64x64xf32, #tpu.memory_space<vmem>>, vector<64x64xf32>
    %4 = arith.addf %3, %2 : vector<64x64xf32>
    %c0_5 = arith.constant 0 : index
    %c0_6 = arith.constant 0 : index
    %5 = vector.load %arg3[%c0_5, %c0_6] : memref<64x64xf32, #tpu.memory_space<vmem>>, vector<64x64xf32>
    tpu.vector_store %arg3[%c0_5, %c0_6], %4 {strides = array<i32>} : memref<64x64xf32, #tpu.memory_space<vmem>>, vector<64x64xf32>,
    return
  }
}

</mosaic_0001>

<llo_original>
// kernel: _model_forward.1
$region0: #{_model_forward.1}
  #allocation0 [shape = 'u32[]', space=smem, size = 0x4, offset = 0x4, fixed_abs, tag = 'smem constant byte address 0x4 - core index']
  #allocation1 [shape = 'u32[144,128]{1,0:T(1,128)}', space=vmem, size = 0x12000, scoped, tag = 'internal scratch']
  %s0 = inlined_call_operand.hbm [shape: f32[64,64], index: 0, kind: input, shape index: {}, may-alias: {0,3}]
  %s1 = inlined_call_operand.hbm [shape: f32[64,64], index: 1, kind: input, shape index: {}]
  %s2 = inlined_call_operand.hbm [shape: f32[64,64], index: 2, kind: input, shape index: {}]
  %s3 = inlined_call_operand.hbm [shape: f32[64,64], index: 3, kind: output, shape index: {}, may-alias: {0,3}]
  %s4 = sld [smem:[#allocation0]]
  $region34: #{_model_forward.1} parent=0
    _
  %s6 = ssub.s32 1, %s4
  %s7 = scalar_select 0, %s6, %s4
  $region1: #{_model_forward.1} parent=0
    #allocation2 [shape = 'u8[32768]{0}', space=vmem, size = 0x8000, scoped, tag = 'input window, operand 0, single buffered']
    #allocation3 [shape = 's32[1]{0}', space=sflag, size = 0x4, scoped, tag = 'scoped memory for _model_forward.1']
    #allocation4 [shape = 's32[1]{0}', space=sflag, size = 0x4, scoped, tag = 'scoped memory for _model_forward.1']
    #allocation5 [shape = 'u8[32768]{0}', space=vmem, size = 0x8000, scoped, tag = 'input window, operand 1, single buffered']
    #allocation6 [shape = 's32[1]{0}', space=sflag, size = 0x4, scoped, tag = 'scoped memory for _model_forward.1']
    #allocation7 [shape = 'u8[32768]{0}', space=vmem, size = 0x8000, scoped, tag = 'input window, operand 2, single buffered']
    #allocation8 [shape = 'u8[32768]{0}', space=vmem, size = 0x8000, scoped, tag = 'output window, operand 0, single buffered']
    %8 = vsyncpa [#allocation3], 0
    %9 = vsyncpa [#allocation6], 0
    %10 = vsyncpa [#allocation4], 0
    // Predicated region
    $region2: #{_model_forward.1} parent=1 // pred_check
      _
    $region3: #{_model_forward.1} parent=1 // pred_check_branch
      %12 = sbr.rel (0) target = $region5
    $region4: #{_model_forward.1} parent=1 // pred_region
      %s14 = ssub.s32 1024, 1024
      %15 = vsyncadd [#allocation3], %s14
      %s16 = sshll.u32 [#allocation2], 4
      %s17 = int_to_ptr.vmem [resolvable:$true] %s16
      %22 = dma.hbm_to_vmem [thread:$0]  %s0, 1024, %s17, [#allocation3], 128, 128, 8
    $region5: #{_model_forward.1} parent=1 // pred_fallthru
      _
    // Predicated region
    $region6: #{_model_forward.1} parent=1 // pred_check
      _
    $region7: #{_model_forward.1} parent=1 // pred_check_branch
      %24 = sbr.rel (0) target = $region9
    $region8: #{_model_forward.1} parent=1 // pred_region
      %s26 = ssub.s32 1024, 1024
      %27 = vsyncadd [#allocation6], %s26
      %s28 = sshll.u32 [#allocation5], 4
      %s29 = int_to_ptr.vmem [resolvable:$true] %s28
      %34 = dma.hbm_to_vmem [thread:$0]  %s1, 1024, %s29, [#allocation6], 128, 128, 8
    $region9: #{_model_forward.1} parent=1 // pred_fallthru
      _
    // Predicated region
    $region10: #{_model_forward.1} parent=1 // pred_check
      _
    $region11: #{_model_forward.1} parent=1 // pred_check_branch
      %36 = sbr.rel (0) target = $region13
    $region12: #{_model_forward.1} parent=1 // pred_region
      %s38 = ssub.s32 1024, 1024
      %39 = vsyncadd [#allocation6], %s38
      %s40 = sshll.u32 [#allocation7], 4
      %s41 = int_to_ptr.vmem [resolvable:$true] %s40
      %46 = dma.hbm_to_vmem [thread:$0]  %s2, 1024, %s41, [#allocation6], 128, 128, 8
    $region13: #{_model_forward.1} parent=1 // pred_fallthru
      _
    // Predicated region
    $region14: #{_model_forward.1} parent=1 // pred_check
      _
    $region15: #{_model_forward.1} parent=1 // pred_check_branch
      %48 = sbr.rel (0) target = $region17
    $region16: #{_model_forward.1} parent=1 // pred_region
      %49 = dma.done [#allocation3], 1024
    $region17: #{_model_forward.1} parent=1 // pred_fallthru
      _
    // Predicated region
    $region18: #{_model_forward.1} parent=1 // pred_check
      _
    $region19: #{_model_forward.1} parent=1 // pred_check_branch
      %51 = sbr.rel (0) target = $region21
    $region20: #{_model_forward.1} parent=1 // pred_region
      %52 = dma.done [#allocation6], 1024
    $region21: #{_model_forward.1} parent=1 // pred_fallthru
      _
    // Predicated region
    $region22: #{_model_forward.1} parent=1 // pred_check
      _
    $region23: #{_model_forward.1} parent=1 // pred_check_branch
      %54 = sbr.rel (0) target = $region25
    $region24: #{_model_forward.1} parent=1 // pred_region
      %55 = dma.done [#allocation6], 1024
    $region25: #{_model_forward.1} parent=1 // pred_fallthru
      _
    %v56 = vld [vmem:[#allocation5] sm:$0xff]
    %v57 = vld [vmem:[#allocation5 + $0x8] sm:$0xff]
    %v58 = vld [vmem:[#allocation5 + $0x10] sm:$0xff]
    %v59 = vld [vmem:[#allocation5 + $0x18] sm:$0xff]
    %v60 = vld [vmem:[#allocation5 + $0x20] sm:$0xff]
    %v61 = vld [vmem:[#allocation5 + $0x28] sm:$0xff]
    %v62 = vld [vmem:[#allocation5 + $0x30] sm:$0xff]
    %v63 = vld [vmem:[#allocation5 + $0x38] sm:$0xff]
    %v64 = vld [vmem:[#allocation7] sm:$0xff]
    %v65 = vld [vmem:[#allocation7 + $0x8] sm:$0xff]
    %v66 = vld [vmem:[#allocation7 + $0x10] sm:$0xff]
    %v67 = vld [vmem:[#allocation7 + $0x18] sm:$0xff]
    %v68 = vld [vmem:[#allocation7 + $0x20] sm:$0xff]
    %v69 = vld [vmem:[#allocation7 + $0x28] sm:$0xff]
    %v70 = vld [vmem:[#allocation7 + $0x30] sm:$0xff]
    %v71 = vld [vmem:[#allocation7 + $0x38] sm:$0xff]
    %vm72 = vcmask 523264
    %v74 = vsel %vm72, %v56, 0
    %v77 = vsel %vm72, %v57, 0
    %v80 = vsel %vm72, %v58, 0
    %v83 = vsel %vm72, %v59, 0
    %v86 = vsel %vm72, %v60, 0
    %v89 = vsel %vm72, %v61, 0
    %v92 = vsel %vm72, %v62, 0
    %v95 = vsel %vm72, %v63, 0
    %97 = vmatprep.subr.mxu0 0.0
    %v98 = vand.u32 %v64, 4294901760
    %99 = vmatpush1.msra.mxu0 %v98
    %100 = vmatprep.subr.mxu0 0.0
    %v101 = vand.u32 %v65, 4294901760
    %102 = vmatpush1.msra.mxu0 %v101
    %103 = vmatprep.subr.mxu0 0.0
    %v104 = vand.u32 %v66, 4294901760
    %105 = vmatpush1.msra.mxu0 %v104
    %106 = vmatprep.subr.mxu0 0.0
    %v107 = vand.u32 %v67, 4294901760
    %108 = vmatpush1.msra.mxu0 %v107
    %109 = vmatprep.subr.mxu0 0.0
    %v110 = vand.u32 %v68, 4294901760
    %111 = vmatpush1.msra.mxu0 %v110
    %112 = vmatprep.subr.mxu0 0.0
    %v113 = vand.u32 %v69, 4294901760
    %114 = vmatpush1.msra.mxu0 %v113
    %115 = vmatprep.subr.mxu0 0.0
    %v116 = vand.u32 %v70, 4294901760
    %117 = vmatpush1.msra.mxu0 %v116
    %118 = vmatprep.subr.mxu0 0.0
    %v119 = vand.u32 %v71, 4294901760
    %120 = vmatpush1.msra.mxu0 %v119
    %121 = vmatprep.subr.mxu0 0.0
    %122 = vmatpush1.msra.mxu0 0.0
    %123 = vmatprep.subr.mxu0 0.0
    %124 = vmatpush1.msra.mxu0 0.0
    %125 = vmatprep.subr.mxu0 0.0
    %126 = vmatpush1.msra.mxu0 0.0
    %127 = vmatprep.subr.mxu0 0.0
    %128 = vmatpush1.msra.mxu0 0.0
    %129 = vmatprep.subr.mxu0 0.0
    %130 = vmatpush1.msra.mxu0 0.0
    %131 = vmatprep.subr.mxu0 0.0
    %132 = vmatpush1.msra.mxu0 0.0
    %133 = vmatprep.subr.mxu0 0.0
    %134 = vmatpush1.msra.mxu0 0.0
    %135 = vmatprep.subr.mxu0 0.0
    %136 = vmatpush1.msra.mxu0 0.0
    %137 = vmatprep.subr.mxu0 0.0
    %138 = vmatpush1.msra.mxu0 0.0
    %139 = vmatprep.subr.mxu0 0.0
    %140 = vmatpush1.msra.mxu0 0.0
    %141 = vmatprep.subr.mxu0 0.0
    %142 = vmatpush1.msra.mxu0 0.0
    %143 = vmatprep.subr.mxu0 0.0
    %144 = vmatpush1.msra.mxu0 0.0
    %145 = vmatprep.subr.mxu0 0.0
    %146 = vmatpush1.msra.mxu0 0.0
    %147 = vmatprep.subr.mxu0 0.0
    %148 = vmatpush1.msra.mxu0 0.0
    %149 = vmatprep.subr.mxu0 0.0
    %150 = vmatpush1.msra.mxu0 0.0
    %151 = vmatprep.subr.mxu0 0.0
    %152 = vmatpush1.msra.mxu0 0.0
    %153 = vmatprep.subr.mxu0 0.0
    %154 = vmatpush1.msra.mxu0 0.0
    %155 = vmatprep.subr.mxu0 0.0
    %156 = vmatpush1.msra.mxu0 0.0
    %157 = vmatprep.subr.mxu0 0.0
    %158 = vmatpush1.msra.mxu0 0.0
    %159 = vmatprep.subr.mxu0 0.0
    %160 = vmatpush1.msra.mxu0 0.0
    %161 = vmatprep.subr.mxu0 0.0
    %162 = vmatpush1.msra.mxu0 0.0
    %163 = vmatprep.subr.mxu0 0.0
    %164 = vmatpush1.msra.mxu0 0.0
    %165 = vmatprep.subr.mxu0 0.0
    %166 = vmatpush1.msra.mxu0 0.0
    %167 = vmatprep.subr.mxu0 0.0
    %168 = vmatpush1.msra.mxu0 0.0
    %169 = vmatprep.mubr.f32.mxu0 0.0
    %v170 = vand.u32 %v74, 4294901760
    %v171 = vsub.f32 %v74, %v170
    %v172 = vand.u32 %v171, 4294901760
    %v173 = vsub.f32 %v171, %v172
    %v174 = vand.u32 %v173, 4294901760
    %175 = vmatmul.mubr.f32.gmra.mrb[0].mxu0 %v174
    %v176 = vpop.f32.mrb[0].mxu0
    %v177 = vadd.f32 0.0, %v176
    %v178 = vpop.f32.mrb[0].mxu0
    %179 = vmatprep.mubr.f32.mxu0 0.0
    %v180 = vand.u32 %v77, 4294901760
    %v181 = vsub.f32 %v77, %v180
    %v182 = vand.u32 %v181, 4294901760
    %v183 = vsub.f32 %v181, %v182
    %v184 = vand.u32 %v183, 4294901760
    %185 = vmatmul.mubr.f32.gmra.mrb[0].mxu0 %v184
    %v186 = vpop.f32.mrb[0].mxu0
    %v187 = vadd.f32 0.0, %v186
    %v188 = vpop.f32.mrb[0].mxu0
    %189 = vmatprep.mubr.f32.mxu0 0.0
    %v190 = vand.u32 %v80, 4294901760
    %v191 = vsub.f32 %v80, %v190
    %v192 = vand.u32 %v191, 4294901760
    %v193 = vsub.f32 %v191, %v192
    %v194 = vand.u32 %v193, 4294901760
    %195 = vmatmul.mubr.f32.gmra.mrb[0].mxu0 %v194
    %v196 = vpop.f32.mrb[0].mxu0
    %v197 = vadd.f32 0.0, %v196
    %v198 = vpop.f32.mrb[0].mxu0
    %199 = vmatprep.mubr.f32.mxu0 0.0
    %v200 = vand.u32 %v83, 4294901760
    %v201 = vsub.f32 %v83, %v200
    %v202 = vand.u32 %v201, 4294901760
    %v203 = vsub.f32 %v201, %v202
    %v204 = vand.u32 %v203, 4294901760
    %205 = vmatmul.mubr.f32.gmra.mrb[0].mxu0 %v204
    %v206 = vpop.f32.mrb[0].mxu0
    %v207 = vadd.f32 0.0, %v206
    %v208 = vpop.f32.mrb[0].mxu0
    %209 = vmatprep.mubr.f32.mxu0 0.0
    %v210 = vand.u32 %v86, 4294901760
    %v211 = vsub.f32 %v86, %v210
    %v212 = vand.u32 %v211, 4294901760
    %v213 = vsub.f32 %v211, %v212
    %v214 = vand.u32 %v213, 4294901760
    %215 = vmatmul.mubr.f32.gmra.mrb[0].mxu0 %v214
    %v216 = vpop.f32.mrb[0].mxu0
    %v217 = vadd.f32 0.0, %v216
    %v218 = vpop.f32.mrb[0].mxu0
    %219 = vmatprep.mubr.f32.mxu0 0.0
    %v220 = vand.u32 %v89, 4294901760
    %v221 = vsub.f32 %v89, %v220
    %v222 = vand.u32 %v221, 4294901760
    %v223 = vsub.f32 %v221, %v222
    %v224 = vand.u32 %v223, 4294901760
    %225 = vmatmul.mubr.f32.gmra.mrb[0].mxu0 %v224
    %v226 = vpop.f32.mrb[0].mxu0
    %v227 = vadd.f32 0.0, %v226
    %v228 = vpop.f32.mrb[0].mxu0
    %229 = vmatprep.mubr.f32.mxu0 0.0
    %v230 = vand.u32 %v92, 4294901760
    %v231 = vsub.f32 %v92, %v230
    %v232 = vand.u32 %v231, 4294901760
    %v233 = vsub.f32 %v231, %v232
    %v234 = vand.u32 %v233, 4294901760
    %235 = vmatmul.mubr.f32.gmra.mrb[0].mxu0 %v234
    %v236 = vpop.f32.mrb[0].mxu0
    %v237 = vadd.f32 0.0, %v236
    %v238 = vpop.f32.mrb[0].mxu0
    %239 = vmatprep.mubr.f32.mxu0 0.0
    %v240 = vand.u32 %v95, 4294901760
    %v241 = vsub.f32 %v95, %v240
    %v242 = vand.u32 %v241, 4294901760
    %v243 = vsub.f32 %v241, %v242
    %v244 = vand.u32 %v243, 4294901760
    %245 = vmatmul.mubr.f32.gmra.mrb[0].mxu0 %v244
    %v246 = vpop.f32.mrb[0].mxu0
    %v247 = vadd.f32 0.0, %v246
    %v248 = vpop.f32.mrb[0].mxu0
    %249 = vdwg.mxu0
    %250 = vmatprep.subr.mxu0 0.0
    %v251 = vand.u32 %v64, 4294901760
    %v252 = vsub.f32 %v64, %v251
    %v253 = vand.u32 %v252, 4294901760
    %v254 = vsub.f32 %v252, %v253
    %v255 = vand.u32 %v254, 4294901760
    %256 = vmatpush1.msra.mxu0 %v255
    %257 = vmatprep.subr.mxu0 0.0
    %v258 = vand.u32 %v65, 4294901760
    %v259 = vsub.f32 %v65, %v258
    %v260 = vand.u32 %v259, 4294901760
    %v261 = vsub.f32 %v259, %v260
    %v262 = vand.u32 %v261, 4294901760
    %263 = vmatpush1.msra.mxu0 %v262
    %264 = vmatprep.subr.mxu0 0.0
    %v265 = vand.u32 %v66, 4294901760
    %v266 = vsub.f32 %v66, %v265
    %v267 = vand.u32 %v266, 4294901760
    %v268 = vsub.f32 %v266, %v267
    %v269 = vand.u32 %v268, 4294901760
    %270 = vmatpush1.msra.mxu0 %v269
    %271 = vmatprep.subr.mxu0 0.0
    %v272 = vand.u32 %v67, 4294901760
    %v273 = vsub.f32 %v67, %v272
    %v274 = vand.u32 %v273, 4294901760
    %v275 = vsub.f32 %v273, %v274
    %v276 = vand.u32 %v275, 4294901760
    %277 = vmatpush1.msra.mxu0 %v276
    %278 = vmatprep.subr.mxu0 0.0
    %v279 = vand.u32 %v68, 4294901760
    %v280 = vsub.f32 %v68, %v279
    %v281 = vand.u32 %v280, 4294901760
    %v282 = vsub.f32 %v280, %v281
    %v283 = vand.u32 %v282, 4294901760
    %284 = vmatpush1.msra.mxu0 %v283
    %285 = vmatprep.subr.mxu0 0.0
    %v286 = vand.u32 %v69, 4294901760
    %v287 = vsub.f32 %v69, %v286
    %v288 = vand.u32 %v287, 4294901760
    %v289 = vsub.f32 %v287, %v288
    %v290 = vand.u32 %v289, 4294901760
    %291 = vmatpush1.msra.mxu0 %v290
    %292 = vmatprep.subr.mxu0 0.0
    %v293 = vand.u32 %v70, 4294901760
    %v294 = vsub.f32 %v70, %v293
    %v295 = vand.u32 %v294, 4294901760
    %v296 = vsub.f32 %v294, %v295
    %v297 = vand.u32 %v296, 4294901760
    %298 = vmatpush1.msra.mxu0 %v297
    %299 = vmatprep.subr.mxu0 0.0
    %v300 = vand.u32 %v71, 4294901760
    %v301 = vsub.f32 %v71, %v300
    %v302 = vand.u32 %v301, 4294901760
    %v303 = vsub.f32 %v301, %v302
    %v304 = vand.u32 %v303, 4294901760
    %305 = vmatpush1.msra.mxu0 %v304
    %306 = vmatprep.subr.mxu0 0.0
    %307 = vmatpush1.msra.mxu0 0.0
    %308 = vmatprep.subr.mxu0 0.0
    %309 = vmatpush1.msra.mxu0 0.0
    %310 = vmatprep.subr.mxu0 0.0
    %311 = vmatpush1.msra.mxu0 0.0
    %312 = vmatprep.subr.mxu0 0.0
    %313 = vmatpush1.msra.mxu0 0.0
    %314 = vmatprep.subr.mxu0 0.0
    %315 = vmatpush1.msra.mxu0 0.0
    %316 = vmatprep.subr.mxu0 0.0
    %317 = vmatpush1.msra.mxu0 0.0
    %318 = vmatprep.subr.mxu0 0.0
    %319 = vmatpush1.msra.mxu0 0.0
    %320 = vmatprep.subr.mxu0 0.0
    %321 = vmatpush1.msra.mxu0 0.0
    %322 = vmatprep.subr.mxu0 0.0
    %323 = vmatpush1.msra.mxu0 0.0
    %324 = vmatprep.subr.mxu0 0.0
    %325 = vmatpush1.msra.mxu0 0.0
    %326 = vmatprep.subr.mxu0 0.0
    %327 = vmatpush1.msra.mxu0 0.0
    %328 = vmatprep.subr.mxu0 0.0
    %329 = vmatpush1.msra.mxu0 0.0
    %330 = vmatprep.subr.mxu0 0.0
    %331 = vmatpush1.msra.mxu0 0.0
    %332 = vmatprep.subr.mxu0 0.0
    %333 = vmatpush1.msra.mxu0 0.0
    %334 = vmatprep.subr.mxu0 0.0
    %335 = vmatpush1.msra.mxu0 0.0
    %336 = vmatprep.subr.mxu0 0.0
    %337 = vmatpush1.msra.mxu0 0.0
    %338 = vmatprep.subr.mxu0 0.0
    %339 = vmatpush1.msra.mxu0 0.0
    %340 = vmatprep.subr.mxu0 0.0
    %341 = vmatpush1.msra.mxu0 0.0
    %342 = vmatprep.subr.mxu0 0.0
    %343 = vmatpush1.msra.mxu0 0.0
    %344 = vmatprep.subr.mxu0 0.0
    %345 = vmatpush1.msra.mxu0 0.0
    %346 = vmatprep.subr.mxu0 0.0
    %347 = vmatpush1.msra.mxu0 0.0
    %348 = vmatprep.subr.mxu0 0.0
    %349 = vmatpush1.msra.mxu0 0.0
    %350 = vmatprep.subr.mxu0 0.0
    %351 = vmatpush1.msra.mxu0 0.0
    %352 = vmatprep.subr.mxu0 0.0
    %353 = vmatpush1.msra.mxu0 0.0
    %354 = vmatprep.mubr.f32.mxu0 0.0
    %v355 = vand.u32 %v74, 4294901760
    %356 = vmatmul.mubr.f32.gmra.mrb[0].mxu0 %v355
    %v357 = vpop.f32.mrb[0].mxu0
    %v358 = vadd.f32 %v177, %v357
    %v359 = vpop.f32.mrb[0].mxu0
    %360 = vmatprep.mubr.f32.mxu0 0.0
    %v361 = vand.u32 %v77, 4294901760
    %362 = vmatmul.mubr.f32.gmra.mrb[0].mxu0 %v361
    %v363 = vpop.f32.mrb[0].mxu0
    %v364 = vadd.f32 %v187, %v363
    %v365 = vpop.f32.mrb[0].mxu0
    %366 = vmatprep.mubr.f32.mxu0 0.0
    %v367 = vand.u32 %v80, 4294901760
    %368 = vmatmul.mubr.f32.gmra.mrb[0].mxu0 %v367
    %v369 = vpop.f32.mrb[0].mxu0
    %v370 = vadd.f32 %v197, %v369
    %v371 = vpop.f32.mrb[0].mxu0
    %372 = vmatprep.mubr.f32.mxu0 0.0
    %v373 = vand.u32 %v83, 4294901760
    %374 = vmatmul.mubr.f32.gmra.mrb[0].mxu0 %v373
    %v375 = vpop.f32.mrb[0].mxu0
    %v376 = vadd.f32 %v207, %v375
    %v377 = vpop.f32.mrb[0].mxu0
    %378 = vmatprep.mubr.f32.mxu0 0.0
    %v379 = vand.u32 %v86, 4294901760
    %380 = vmatmul.mubr.f32.gmra.mrb[0].mxu0 %v379
    %v381 = vpop.f32.mrb[0].mxu0
    %v382 = vadd.f32 %v217, %v381
    %v383 = vpop.f32.mrb[0].mxu0
    %384 = vmatprep.mubr.f32.mxu0 0.0
    %v385 = vand.u32 %v89, 4294901760
    %386 = vmatmul.mubr.f32.gmra.mrb[0].mxu0 %v385
    %v387 = vpop.f32.mrb[0].mxu0
    %v388 = vadd.f32 %v227, %v387
    %v389 = vpop.f32.mrb[0].mxu0
    %390 = vmatprep.mubr.f32.mxu0 0.0
    %v391 = vand.u32 %v92, 4294901760
    %392 = vmatmul.mubr.f32.gmra.mrb[0].mxu0 %v391
    %v393 = vpop.f32.mrb[0].mxu0
    %v394 = vadd.f32 %v237, %v393
    %v395 = vpop.f32.mrb[0].mxu0
    %396 = vmatprep.mubr.f32.mxu0 0.0
    %v397 = vand.u32 %v95, 4294901760
    %398 = vmatmul.mubr.f32.gmra.mrb[0].mxu0 %v397
    %v399 = vpop.f32.mrb[0].mxu0
    %v400 = vadd.f32 %v247, %v399
    %v401 = vpop.f32.mrb[0].mxu0
    %402 = vdwg.mxu0
    %403 = vmatprep.subr.mxu0 0.0
    %v404 = vand.u32 %v64, 4294901760
    %v405 = vsub.f32 %v64, %v404
    %406 = vmatpush1.msra.mxu0 %v405
    %407 = vmatprep.subr.mxu0 0.0
    %v408 = vand.u32 %v65, 4294901760
    %v409 = vsub.f32 %v65, %v408
    %410 = vmatpush1.msra.mxu0 %v409
    %411 = vmatprep.subr.mxu0 0.0
    %v412 = vand.u32 %v66, 4294901760
    %v413 = vsub.f32 %v66, %v412
    %414 = vmatpush1.msra.mxu0 %v413
    %415 = vmatprep.subr.mxu0 0.0
    %v416 = vand.u32 %v67, 4294901760
    %v417 = vsub.f32 %v67, %v416
    %418 = vmatpush1.msra.mxu0 %v417
    %419 = vmatprep.subr.mxu0 0.0
    %v420 = vand.u32 %v68, 4294901760
    %v421 = vsub.f32 %v68, %v420
    %422 = vmatpush1.msra.mxu0 %v421
    %423 = vmatprep.subr.mxu0 0.0
    %v424 = vand.u32 %v69, 4294901760
    %v425 = vsub.f32 %v69, %v424
    %426 = vmatpush1.msra.mxu0 %v425
    %427 = vmatprep.subr.mxu0 0.0
    %v428 = vand.u32 %v70, 4294901760
    %v429 = vsub.f32 %v70, %v428
    %430 = vmatpush1.msra.mxu0 %v429
    %431 = vmatprep.subr.mxu0 0.0
    %v432 = vand.u32 %v71, 4294901760
    %v433 = vsub.f32 %v71, %v432
    %434 = vmatpush1.msra.mxu0 %v433
    %435 = vmatprep.subr.mxu0 0.0
    %436 = vmatpush1.msra.mxu0 0.0
    %437 = vmatprep.subr.mxu0 0.0
    %438 = vmatpush1.msra.mxu0 0.0
    %439 = vmatprep.subr.mxu0 0.0
    %440 = vmatpush1.msra.mxu0 0.0
    %441 = vmatprep.subr.mxu0 0.0
    %442 = vmatpush1.msra.mxu0 0.0
    %443 = vmatprep.subr.mxu0 0.0
    %444 = vmatpush1.msra.mxu0 0.0
    %445 = vmatprep.subr.mxu0 0.0
    %446 = vmatpush1.msra.mxu0 0.0
    %447 = vmatprep.subr.mxu0 0.0
    %448 = vmatpush1.msra.mxu0 0.0
    %449 = vmatprep.subr.mxu0 0.0
    %450 = vmatpush1.msra.mxu0 0.0
    %451 = vmatprep.subr.mxu0 0.0
    %452 = vmatpush1.msra.mxu0 0.0
    %453 = vmatprep.subr.mxu0 0.0
    %454 = vmatpush1.msra.mxu0 0.0
    %455 = vmatprep.subr.mxu0 0.0
    %456 = vmatpush1.msra.mxu0 0.0
    %457 = vmatprep.subr.mxu0 0.0
    %458 = vmatpush1.msra.mxu0 0.0
    %459 = vmatprep.subr.mxu0 0.0
    %460 = vmatpush1.msra.mxu0 0.0
    %461 = vmatprep.subr.mxu0 0.0
    %462 = vmatpush1.msra.mxu0 0.0
    %463 = vmatprep.subr.mxu0 0.0
    %464 = vmatpush1.msra.mxu0 0.0
    %465 = vmatprep.subr.mxu0 0.0
    %466 = vmatpush1.msra.mxu0 0.0
    %467 = vmatprep.subr.mxu0 0.0
    %468 = vmatpush1.msra.mxu0 0.0
    %469 = vmatprep.subr.mxu0 0.0
    %470 = vmatpush1.msra.mxu0 0.0
    %471 = vmatprep.subr.mxu0 0.0
    %472 = vmatpush1.msra.mxu0 0.0
    %473 = vmatprep.subr.mxu0 0.0
    %474 = vmatpush1.msra.mxu0 0.0
    %475 = vmatprep.subr.mxu0 0.0
    %476 = vmatpush1.msra.mxu0 0.0
    %477 = vmatprep.subr.mxu0 0.0
    %478 = vmatpush1.msra.mxu0 0.0
    %479 = vmatprep.subr.mxu0 0.0
    %480 = vmatpush1.msra.mxu0 0.0
    %481 = vmatprep.subr.mxu0 0.0
    %482 = vmatpush1.msra.mxu0 0.0
    %483 = vmatprep.mubr.f32.mxu0 0.0
    %v484 = vand.u32 %v74, 4294901760
    %v485 = vsub.f32 %v74, %v484
    %486 = vmatmul.mubr.f32.gmra.mrb[0].mxu0 %v485
    %v487 = vpop.f32.mrb[0].mxu0
    %v488 = vadd.f32 %v358, %v487
    %v489 = vpop.f32.mrb[0].mxu0
    %490 = vmatprep.mubr.f32.mxu0 0.0
    %v491 = vand.u32 %v77, 4294901760
    %v492 = vsub.f32 %v77, %v491
    %493 = vmatmul.mubr.f32.gmra.mrb[0].mxu0 %v492
    %v494 = vpop.f32.mrb[0].mxu0
    %v495 = vadd.f32 %v364, %v494
    %v496 = vpop.f32.mrb[0].mxu0
    %497 = vmatprep.mubr.f32.mxu0 0.0
    %v498 = vand.u32 %v80, 4294901760
    %v499 = vsub.f32 %v80, %v498
    %500 = vmatmul.mubr.f32.gmra.mrb[0].mxu0 %v499
    %v501 = vpop.f32.mrb[0].mxu0
    %v502 = vadd.f32 %v370, %v501
    %v503 = vpop.f32.mrb[0].mxu0
    %504 = vmatprep.mubr.f32.mxu0 0.0
    %v505 = vand.u32 %v83, 4294901760
    %v506 = vsub.f32 %v83, %v505
    %507 = vmatmul.mubr.f32.gmra.mrb[0].mxu0 %v506
    %v508 = vpop.f32.mrb[0].mxu0
    %v509 = vadd.f32 %v376, %v508
    %v510 = vpop.f32.mrb[0].mxu0
    %511 = vmatprep.mubr.f32.mxu0 0.0
    %v512 = vand.u32 %v86, 4294901760
    %v513 = vsub.f32 %v86, %v512
    %514 = vmatmul.mubr.f32.gmra.mrb[0].mxu0 %v513
    %v515 = vpop.f32.mrb[0].mxu0
    %v516 = vadd.f32 %v382, %v515
    %v517 = vpop.f32.mrb[0].mxu0
    %518 = vmatprep.mubr.f32.mxu0 0.0
    %v519 = vand.u32 %v89, 4294901760
    %v520 = vsub.f32 %v89, %v519
    %521 = vmatmul.mubr.f32.gmra.mrb[0].mxu0 %v520
    %v522 = vpop.f32.mrb[0].mxu0
    %v523 = vadd.f32 %v388, %v522
    %v524 = vpop.f32.mrb[0].mxu0
    %525 = vmatprep.mubr.f32.mxu0 0.0
    %v526 = vand.u32 %v92, 4294901760
    %v527 = vsub.f32 %v92, %v526
    %528 = vmatmul.mubr.f32.gmra.mrb[0].mxu0 %v527
    %v529 = vpop.f32.mrb[0].mxu0
    %v530 = vadd.f32 %v394, %v529
    %v531 = vpop.f32.mrb[0].mxu0
    %532 = vmatprep.mubr.f32.mxu0 0.0
    %v533 = vand.u32 %v95, 4294901760
    %v534 = vsub.f32 %v95, %v533
    %535 = vmatmul.mubr.f32.gmra.mrb[0].mxu0 %v534
    %v536 = vpop.f32.mrb[0].mxu0
    %v537 = vadd.f32 %v400, %v536
    %v538 = vpop.f32.mrb[0].mxu0
    %539 = vdwg.mxu0
    %540 = vmatprep.subr.mxu0 0.0
    %v541 = vand.u32 %v64, 4294901760
    %542 = vmatpush1.msra.mxu0 %v541
    %543 = vmatprep.subr.mxu0 0.0
    %v544 = vand.u32 %v65, 4294901760
    %545 = vmatpush1.msra.mxu0 %v544
    %546 = vmatprep.subr.mxu0 0.0
    %v547 = vand.u32 %v66, 4294901760
    %548 = vmatpush1.msra.mxu0 %v547
    %549 = vmatprep.subr.mxu0 0.0
    %v550 = vand.u32 %v67, 4294901760
    %551 = vmatpush1.msra.mxu0 %v550
    %552 = vmatprep.subr.mxu0 0.0
    %v553 = vand.u32 %v68, 4294901760
    %554 = vmatpush1.msra.mxu0 %v553
    %555 = vmatprep.subr.mxu0 0.0
    %v556 = vand.u32 %v69, 4294901760
    %557 = vmatpush1.msra.mxu0 %v556
    %558 = vmatprep.subr.mxu0 0.0
    %v559 = vand.u32 %v70, 4294901760
    %560 = vmatpush1.msra.mxu0 %v559
    %561 = vmatprep.subr.mxu0 0.0
    %v562 = vand.u32 %v71, 4294901760
    %563 = vmatpush1.msra.mxu0 %v562
    %564 = vmatprep.subr.mxu0 0.0
    %565 = vmatpush1.msra.mxu0 0.0
    %566 = vmatprep.subr.mxu0 0.0
    %567 = vmatpush1.msra.mxu0 0.0
    %568 = vmatprep.subr.mxu0 0.0
    %569 = vmatpush1.msra.mxu0 0.0
    %570 = vmatprep.subr.mxu0 0.0
    %571 = vmatpush1.msra.mxu0 0.0
    %572 = vmatprep.subr.mxu0 0.0
    %573 = vmatpush1.msra.mxu0 0.0
    %574 = vmatprep.subr.mxu0 0.0
    %575 = vmatpush1.msra.mxu0 0.0
    %576 = vmatprep.subr.mxu0 0.0
    %577 = vmatpush1.msra.mxu0 0.0
    %578 = vmatprep.subr.mxu0 0.0
    %579 = vmatpush1.msra.mxu0 0.0
    %580 = vmatprep.subr.mxu0 0.0
    %581 = vmatpush1.msra.mxu0 0.0
    %582 = vmatprep.subr.mxu0 0.0
    %583 = vmatpush1.msra.mxu0 0.0
    %584 = vmatprep.subr.mxu0 0.0
    %585 = vmatpush1.msra.mxu0 0.0
    %586 = vmatprep.subr.mxu0 0.0
    %587 = vmatpush1.msra.mxu0 0.0
    %588 = vmatprep.subr.mxu0 0.0
    %589 = vmatpush1.msra.mxu0 0.0
    %590 = vmatprep.subr.mxu0 0.0
    %591 = vmatpush1.msra.mxu0 0.0
    %592 = vmatprep.subr.mxu0 0.0
    %593 = vmatpush1.msra.mxu0 0.0
    %594 = vmatprep.subr.mxu0 0.0
    %595 = vmatpush1.msra.mxu0 0.0
    %596 = vmatprep.subr.mxu0 0.0
    %597 = vmatpush1.msra.mxu0 0.0
    %598 = vmatprep.subr.mxu0 0.0
    %599 = vmatpush1.msra.mxu0 0.0
    %600 = vmatprep.subr.mxu0 0.0
    %601 = vmatpush1.msra.mxu0 0.0
    %602 = vmatprep.subr.mxu0 0.0
    %603 = vmatpush1.msra.mxu0 0.0
    %604 = vmatprep.subr.mxu0 0.0
    %605 = vmatpush1.msra.mxu0 0.0
    %606 = vmatprep.subr.mxu0 0.0
    %607 = vmatpush1.msra.mxu0 0.0
    %608 = vmatprep.subr.mxu0 0.0
    %609 = vmatpush1.msra.mxu0 0.0
    %610 = vmatprep.subr.mxu0 0.0
    %611 = vmatpush1.msra.mxu0 0.0
    %612 = vmatprep.mubr.f32.mxu0 0.0
    %v613 = vand.u32 %v74, 4294901760
    %v614 = vsub.f32 %v74, %v613
    %v615 = vand.u32 %v614, 4294901760
    %616 = vmatmul.mubr.f32.gmra.mrb[0].mxu0 %v615
    %v617 = vpop.f32.mrb[0].mxu0
    %v618 = vadd.f32 %v488, %v617
    %v619 = vpop.f32.mrb[0].mxu0
    %620 = vmatprep.mubr.f32.mxu0 0.0
    %v621 = vand.u32 %v77, 4294901760
    %v622 = vsub.f32 %v77, %v621
    %v623 = vand.u32 %v622, 4294901760
    %624 = vmatmul.mubr.f32.gmra.mrb[0].mxu0 %v623
    %v625 = vpop.f32.mrb[0].mxu0
    %v626 = vadd.f32 %v495, %v625
    %v627 = vpop.f32.mrb[0].mxu0
    %628 = vmatprep.mubr.f32.mxu0 0.0
    %v629 = vand.u32 %v80, 4294901760
    %v630 = vsub.f32 %v80, %v629
    %v631 = vand.u32 %v630, 4294901760
    %632 = vmatmul.mubr.f32.gmra.mrb[0].mxu0 %v631
    %v633 = vpop.f32.mrb[0].mxu0
    %v634 = vadd.f32 %v502, %v633
    %v635 = vpop.f32.mrb[0].mxu0
    %636 = vmatprep.mubr.f32.mxu0 0.0
    %v637 = vand.u32 %v83, 4294901760
    %v638 = vsub.f32 %v83, %v637
    %v639 = vand.u32 %v638, 4294901760
    %640 = vmatmul.mubr.f32.gmra.mrb[0].mxu0 %v639
    %v641 = vpop.f32.mrb[0].mxu0
    %v642 = vadd.f32 %v509, %v641
    %v643 = vpop.f32.mrb[0].mxu0
    %644 = vmatprep.mubr.f32.mxu0 0.0
    %v645 = vand.u32 %v86, 4294901760
    %v646 = vsub.f32 %v86, %v645
    %v647 = vand.u32 %v646, 4294901760
    %648 = vmatmul.mubr.f32.gmra.mrb[0].mxu0 %v647
    %v649 = vpop.f32.mrb[0].mxu0
    %v650 = vadd.f32 %v516, %v649
    %v651 = vpop.f32.mrb[0].mxu0
    %652 = vmatprep.mubr.f32.mxu0 0.0
    %v653 = vand.u32 %v89, 4294901760
    %v654 = vsub.f32 %v89, %v653
    %v655 = vand.u32 %v654, 4294901760
    %656 = vmatmul.mubr.f32.gmra.mrb[0].mxu0 %v655
    %v657 = vpop.f32.mrb[0].mxu0
    %v658 = vadd.f32 %v523, %v657
    %v659 = vpop.f32.mrb[0].mxu0
    %660 = vmatprep.mubr.f32.mxu0 0.0
    %v661 = vand.u32 %v92, 4294901760
    %v662 = vsub.f32 %v92, %v661
    %v663 = vand.u32 %v662, 4294901760
    %664 = vmatmul.mubr.f32.gmra.mrb[0].mxu0 %v663
    %v665 = vpop.f32.mrb[0].mxu0
    %v666 = vadd.f32 %v530, %v665
    %v667 = vpop.f32.mrb[0].mxu0
    %668 = vmatprep.mubr.f32.mxu0 0.0
    %v669 = vand.u32 %v95, 4294901760
    %v670 = vsub.f32 %v95, %v669
    %v671 = vand.u32 %v670, 4294901760
    %672 = vmatmul.mubr.f32.gmra.mrb[0].mxu0 %v671
    %v673 = vpop.f32.mrb[0].mxu0
    %v674 = vadd.f32 %v537, %v673
    %v675 = vpop.f32.mrb[0].mxu0
    %676 = vdwg.mxu0
    %677 = vmatprep.subr.mxu0 0.0
    %v678 = vand.u32 %v64, 4294901760
    %v679 = vsub.f32 %v64, %v678
    %v680 = vand.u32 %v679, 4294901760
    %681 = vmatpush1.msra.mxu0 %v680
    %682 = vmatprep.subr.mxu0 0.0
    %v683 = vand.u32 %v65, 4294901760
    %v684 = vsub.f32 %v65, %v683
    %v685 = vand.u32 %v684, 4294901760
    %686 = vmatpush1.msra.mxu0 %v685
    %687 = vmatprep.subr.mxu0 0.0
    %v688 = vand.u32 %v66, 4294901760
    %v689 = vsub.f32 %v66, %v688
    %v690 = vand.u32 %v689, 4294901760
    %691 = vmatpush1.msra.mxu0 %v690
    %692 = vmatprep.subr.mxu0 0.0
    %v693 = vand.u32 %v67, 4294901760
    %v694 = vsub.f32 %v67, %v693
    %v695 = vand.u32 %v694, 4294901760
    %696 = vmatpush1.msra.mxu0 %v695
    %697 = vmatprep.subr.mxu0 0.0
    %v698 = vand.u32 %v68, 4294901760
    %v699 = vsub.f32 %v68, %v698
    %v700 = vand.u32 %v699, 4294901760
    %701 = vmatpush1.msra.mxu0 %v700
    %702 = vmatprep.subr.mxu0 0.0
    %v703 = vand.u32 %v69, 4294901760
    %v704 = vsub.f32 %v69, %v703
    %v705 = vand.u32 %v704, 4294901760
    %706 = vmatpush1.msra.mxu0 %v705
    %707 = vmatprep.subr.mxu0 0.0
    %v708 = vand.u32 %v70, 4294901760
    %v709 = vsub.f32 %v70, %v708
    %v710 = vand.u32 %v709, 4294901760
    %711 = vmatpush1.msra.mxu0 %v710
    %712 = vmatprep.subr.mxu0 0.0
    %v713 = vand.u32 %v71, 4294901760
    %v714 = vsub.f32 %v71, %v713
    %v715 = vand.u32 %v714, 4294901760
    %716 = vmatpush1.msra.mxu0 %v715
    %717 = vmatprep.subr.mxu0 0.0
    %718 = vmatpush1.msra.mxu0 0.0
    %719 = vmatprep.subr.mxu0 0.0
    %720 = vmatpush1.msra.mxu0 0.0
    %721 = vmatprep.subr.mxu0 0.0
    %722 = vmatpush1.msra.mxu0 0.0
    %723 = vmatprep.subr.mxu0 0.0
    %724 = vmatpush1.msra.mxu0 0.0
    %725 = vmatprep.subr.mxu0 0.0
    %726 = vmatpush1.msra.mxu0 0.0
    %727 = vmatprep.subr.mxu0 0.0
    %728 = vmatpush1.msra.mxu0 0.0
    %729 = vmatprep.subr.mxu0 0.0
    %730 = vmatpush1.msra.mxu0 0.0
    %731 = vmatprep.subr.mxu0 0.0
    %732 = vmatpush1.msra.mxu0 0.0
    %733 = vmatprep.subr.mxu0 0.0
    %734 = vmatpush1.msra.mxu0 0.0
    %735 = vmatprep.subr.mxu0 0.0
    %736 = vmatpush1.msra.mxu0 0.0
    %737 = vmatprep.subr.mxu0 0.0
    %738 = vmatpush1.msra.mxu0 0.0
    %739 = vmatprep.subr.mxu0 0.0
    %740 = vmatpush1.msra.mxu0 0.0
    %741 = vmatprep.subr.mxu0 0.0
    %742 = vmatpush1.msra.mxu0 0.0
    %743 = vmatprep.subr.mxu0 0.0
    %744 = vmatpush1.msra.mxu0 0.0
    %745 = vmatprep.subr.mxu0 0.0
    %746 = vmatpush1.msra.mxu0 0.0
    %747 = vmatprep.subr.mxu0 0.0
    %748 = vmatpush1.msra.mxu0 0.0
    %749 = vmatprep.subr.mxu0 0.0
    %750 = vmatpush1.msra.mxu0 0.0
    %751 = vmatprep.subr.mxu0 0.0
    %752 = vmatpush1.msra.mxu0 0.0
    %753 = vmatprep.subr.mxu0 0.0
    %754 = vmatpush1.msra.mxu0 0.0
    %755 = vmatprep.subr.mxu0 0.0
    %756 = vmatpush1.msra.mxu0 0.0
    %757 = vmatprep.subr.mxu0 0.0
    %758 = vmatpush1.msra.mxu0 0.0
    %759 = vmatprep.subr.mxu0 0.0
    %760 = vmatpush1.msra.mxu0 0.0
    %761 = vmatprep.subr.mxu0 0.0
    %762 = vmatpush1.msra.mxu0 0.0
    %763 = vmatprep.subr.mxu0 0.0
    %764 = vmatpush1.msra.mxu0 0.0
    %765 = vmatprep.mubr.f32.mxu0 0.0
    %v766 = vand.u32 %v74, 4294901760
    %767 = vmatmul.mubr.f32.gmra.mrb[0].mxu0 %v766
    %v768 = vpop.f32.mrb[0].mxu0
    %v769 = vadd.f32 %v618, %v768
    %v770 = vpop.f32.mrb[0].mxu0
    %771 = vmatprep.mubr.f32.mxu0 0.0
    %v772 = vand.u32 %v77, 4294901760
    %773 = vmatmul.mubr.f32.gmra.mrb[0].mxu0 %v772
    %v774 = vpop.f32.mrb[0].mxu0
    %v775 = vadd.f32 %v626, %v774
    %v776 = vpop.f32.mrb[0].mxu0
    %777 = vmatprep.mubr.f32.mxu0 0.0
    %v778 = vand.u32 %v80, 4294901760
    %779 = vmatmul.mubr.f32.gmra.mrb[0].mxu0 %v778
    %v780 = vpop.f32.mrb[0].mxu0
    %v781 = vadd.f32 %v634, %v780
    %v782 = vpop.f32.mrb[0].mxu0
    %783 = vmatprep.mubr.f32.mxu0 0.0
    %v784 = vand.u32 %v83, 4294901760
    %785 = vmatmul.mubr.f32.gmra.mrb[0].mxu0 %v784
    %v786 = vpop.f32.mrb[0].mxu0
    %v787 = vadd.f32 %v642, %v786
    %v788 = vpop.f32.mrb[0].mxu0
    %789 = vmatprep.mubr.f32.mxu0 0.0
    %v790 = vand.u32 %v86, 4294901760
    %791 = vmatmul.mubr.f32.gmra.mrb[0].mxu0 %v790
    %v792 = vpop.f32.mrb[0].mxu0
    %v793 = vadd.f32 %v650, %v792
    %v794 = vpop.f32.mrb[0].mxu0
    %795 = vmatprep.mubr.f32.mxu0 0.0
    %v796 = vand.u32 %v89, 4294901760
    %797 = vmatmul.mubr.f32.gmra.mrb[0].mxu0 %v796
    %v798 = vpop.f32.mrb[0].mxu0
    %v799 = vadd.f32 %v658, %v798
    %v800 = vpop.f32.mrb[0].mxu0
    %801 = vmatprep.mubr.f32.mxu0 0.0
    %v802 = vand.u32 %v92, 4294901760
    %803 = vmatmul.mubr.f32.gmra.mrb[0].mxu0 %v802
    %v804 = vpop.f32.mrb[0].mxu0
    %v805 = vadd.f32 %v666, %v804
    %v806 = vpop.f32.mrb[0].mxu0
    %807 = vmatprep.mubr.f32.mxu0 0.0
    %v808 = vand.u32 %v95, 4294901760
    %809 = vmatmul.mubr.f32.gmra.mrb[0].mxu0 %v808
    %v810 = vpop.f32.mrb[0].mxu0
    %v811 = vadd.f32 %v674, %v810
    %v812 = vpop.f32.mrb[0].mxu0
    %813 = vdwg.mxu0
    %814 = vmatprep.subr.mxu0 0.0
    %v815 = vand.u32 %v64, 4294901760
    %816 = vmatpush1.msra.mxu0 %v815
    %817 = vmatprep.subr.mxu0 0.0
    %v818 = vand.u32 %v65, 4294901760
    %819 = vmatpush1.msra.mxu0 %v818
    %820 = vmatprep.subr.mxu0 0.0
    %v821 = vand.u32 %v66, 4294901760
    %822 = vmatpush1.msra.mxu0 %v821
    %823 = vmatprep.subr.mxu0 0.0
    %v824 = vand.u32 %v67, 4294901760
    %825 = vmatpush1.msra.mxu0 %v824
    %826 = vmatprep.subr.mxu0 0.0
    %v827 = vand.u32 %v68, 4294901760
    %828 = vmatpush1.msra.mxu0 %v827
    %829 = vmatprep.subr.mxu0 0.0
    %v830 = vand.u32 %v69, 4294901760
    %831 = vmatpush1.msra.mxu0 %v830
    %832 = vmatprep.subr.mxu0 0.0
    %v833 = vand.u32 %v70, 4294901760
    %834 = vmatpush1.msra.mxu0 %v833
    %835 = vmatprep.subr.mxu0 0.0
    %v836 = vand.u32 %v71, 4294901760
    %837 = vmatpush1.msra.mxu0 %v836
    %838 = vmatprep.subr.mxu0 0.0
    %839 = vmatpush1.msra.mxu0 0.0
    %840 = vmatprep.subr.mxu0 0.0
    %841 = vmatpush1.msra.mxu0 0.0
    %842 = vmatprep.subr.mxu0 0.0
    %843 = vmatpush1.msra.mxu0 0.0
    %844 = vmatprep.subr.mxu0 0.0
    %845 = vmatpush1.msra.mxu0 0.0
    %846 = vmatprep.subr.mxu0 0.0
    %847 = vmatpush1.msra.mxu0 0.0
    %848 = vmatprep.subr.mxu0 0.0
    %849 = vmatpush1.msra.mxu0 0.0
    %850 = vmatprep.subr.mxu0 0.0
    %851 = vmatpush1.msra.mxu0 0.0
    %852 = vmatprep.subr.mxu0 0.0
    %853 = vmatpush1.msra.mxu0 0.0
    %854 = vmatprep.subr.mxu0 0.0
    %855 = vmatpush1.msra.mxu0 0.0
    %856 = vmatprep.subr.mxu0 0.0
    %857 = vmatpush1.msra.mxu0 0.0
    %858 = vmatprep.subr.mxu0 0.0
    %859 = vmatpush1.msra.mxu0 0.0
    %860 = vmatprep.subr.mxu0 0.0
    %861 = vmatpush1.msra.mxu0 0.0
    %862 = vmatprep.subr.mxu0 0.0
    %863 = vmatpush1.msra.mxu0 0.0
    %864 = vmatprep.subr.mxu0 0.0
    %865 = vmatpush1.msra.mxu0 0.0
    %866 = vmatprep.subr.mxu0 0.0
    %867 = vmatpush1.msra.mxu0 0.0
    %868 = vmatprep.subr.mxu0 0.0
    %869 = vmatpush1.msra.mxu0 0.0
    %870 = vmatprep.subr.mxu0 0.0
    %871 = vmatpush1.msra.mxu0 0.0
    %872 = vmatprep.subr.mxu0 0.0
    %873 = vmatpush1.msra.mxu0 0.0
    %874 = vmatprep.subr.mxu0 0.0
    %875 = vmatpush1.msra.mxu0 0.0
    %876 = vmatprep.subr.mxu0 0.0
    %877 = vmatpush1.msra.mxu0 0.0
    %878 = vmatprep.subr.mxu0 0.0
    %879 = vmatpush1.msra.mxu0 0.0
    %880 = vmatprep.subr.mxu0 0.0
    %881 = vmatpush1.msra.mxu0 0.0
    %882 = vmatprep.subr.mxu0 0.0
    %883 = vmatpush1.msra.mxu0 0.0
    %884 = vmatprep.subr.mxu0 0.0
    %885 = vmatpush1.msra.mxu0 0.0
    %886 = vmatprep.mubr.f32.mxu0 0.0
    %v887 = vand.u32 %v74, 4294901760
    %888 = vmatmul.mubr.f32.gmra.mrb[0].mxu0 %v887
    %v889 = vpop.f32.mrb[0].mxu0
    %v890 = vadd.f32 %v769, %v889
    %v891 = vpop.f32.mrb[0].mxu0
    %892 = vmatprep.mubr.f32.mxu0 0.0
    %v893 = vand.u32 %v77, 4294901760
    %894 = vmatmul.mubr.f32.gmra.mrb[0].mxu0 %v893
    %v895 = vpop.f32.mrb[0].mxu0
    %v896 = vadd.f32 %v775, %v895
    %v897 = vpop.f32.mrb[0].mxu0
    %898 = vmatprep.mubr.f32.mxu0 0.0
    %v899 = vand.u32 %v80, 4294901760
    %900 = vmatmul.mubr.f32.gmra.mrb[0].mxu0 %v899
    %v901 = vpop.f32.mrb[0].mxu0
    %v902 = vadd.f32 %v781, %v901
    %v903 = vpop.f32.mrb[0].mxu0
    %904 = vmatprep.mubr.f32.mxu0 0.0
    %v905 = vand.u32 %v83, 4294901760
    %906 = vmatmul.mubr.f32.gmra.mrb[0].mxu0 %v905
    %v907 = vpop.f32.mrb[0].mxu0
    %v908 = vadd.f32 %v787, %v907
    %v909 = vpop.f32.mrb[0].mxu0
    %910 = vmatprep.mubr.f32.mxu0 0.0
    %v911 = vand.u32 %v86, 4294901760
    %912 = vmatmul.mubr.f32.gmra.mrb[0].mxu0 %v911
    %v913 = vpop.f32.mrb[0].mxu0
    %v914 = vadd.f32 %v793, %v913
    %v915 = vpop.f32.mrb[0].mxu0
    %916 = vmatprep.mubr.f32.mxu0 0.0
    %v917 = vand.u32 %v89, 4294901760
    %918 = vmatmul.mubr.f32.gmra.mrb[0].mxu0 %v917
    %v919 = vpop.f32.mrb[0].mxu0
    %v920 = vadd.f32 %v799, %v919
    %v921 = vpop.f32.mrb[0].mxu0
    %922 = vmatprep.mubr.f32.mxu0 0.0
    %v923 = vand.u32 %v92, 4294901760
    %924 = vmatmul.mubr.f32.gmra.mrb[0].mxu0 %v923
    %v925 = vpop.f32.mrb[0].mxu0
    %v926 = vadd.f32 %v805, %v925
    %v927 = vpop.f32.mrb[0].mxu0
    %928 = vmatprep.mubr.f32.mxu0 0.0
    %v929 = vand.u32 %v95, 4294901760
    %930 = vmatmul.mubr.f32.gmra.mrb[0].mxu0 %v929
    %v931 = vpop.f32.mrb[0].mxu0
    %v932 = vadd.f32 %v811, %v931
    %v933 = vpop.f32.mrb[0].mxu0
    %934 = vdwg.mxu0
    %v935 = vld [vmem:[#allocation2] sm:$0xff]
    %v936 = vld [vmem:[#allocation2 + $0x8] sm:$0xff]
    %v937 = vld [vmem:[#allocation2 + $0x10] sm:$0xff]
    %v938 = vld [vmem:[#allocation2 + $0x18] sm:$0xff]
    %v939 = vld [vmem:[#allocation2 + $0x20] sm:$0xff]
    %v940 = vld [vmem:[#allocation2 + $0x28] sm:$0xff]
    %v941 = vld [vmem:[#allocation2 + $0x30] sm:$0xff]
    %v942 = vld [vmem:[#allocation2 + $0x38] sm:$0xff]
    %v943 = vadd.f32 %v935, %v890
    %v944 = vadd.f32 %v936, %v896
    %v945 = vadd.f32 %v937, %v902
    %v946 = vadd.f32 %v938, %v908
    %v947 = vadd.f32 %v939, %v914
    %v948 = vadd.f32 %v940, %v920
    %v949 = vadd.f32 %v941, %v926
    %v950 = vadd.f32 %v942, %v932
    %951 = vst.msk [vmem:[#allocation8] sm:$0xff] %vm72, %v943
    %952 = vst.msk [vmem:[#allocation8 + $0x8] sm:$0xff] %vm72, %v944
    %953 = vst.msk [vmem:[#allocation8 + $0x10] sm:$0xff] %vm72, %v945
    %954 = vst.msk [vmem:[#allocation8 + $0x18] sm:$0xff] %vm72, %v946
    %955 = vst.msk [vmem:[#allocation8 + $0x20] sm:$0xff] %vm72, %v947
    %956 = vst.msk [vmem:[#allocation8 + $0x28] sm:$0xff] %vm72, %v948
    %957 = vst.msk [vmem:[#allocation8 + $0x30] sm:$0xff] %vm72, %v949
    %958 = vst.msk [vmem:[#allocation8 + $0x38] sm:$0xff] %vm72, %v950
    // Predicated region
    $region26: #{_model_forward.1} parent=1 // pred_check
      _
    $region27: #{_model_forward.1} parent=1 // pred_check_branch
      %960 = sbr.rel (0) target = $region29
    $region28: #{_model_forward.1} parent=1 // pred_region
      %s962 = ssub.s32 1024, 1024
      %963 = vsyncadd [#allocation4], %s962
      %s964 = sshll.u32 [#allocation8], 4
      %s965 = int_to_ptr.vmem [resolvable:$true] %s964
      %970 = dma.vmem_to_hbm [thread:$0]  %s965, 1024, %s3, [#allocation4], 128, 128, 8
    $region29: #{_model_forward.1} parent=1 // pred_fallthru
      _
    // Predicated region
    $region30: #{_model_forward.1} parent=1 // pred_check
      _
    $region31: #{_model_forward.1} parent=1 // pred_check_branch
      %972 = sbr.rel (0) target = $region33
    $region32: #{_model_forward.1} parent=1 // pred_region
      %973 = dma.done [#allocation4], 1024
    $region33: #{_model_forward.1} parent=1 // pred_fallthru
      _
    %974 = vsyncpa [#allocation3], 1
    %975 = vsyncpa [#allocation6], 1
    %976 = vsyncpa [#allocation4], 1

</llo_original>
